<compile_context>
chip_gen: v7x
topology: tpu7x:2x2x1
jax: 0.10.0
libtpu: 0.0.40
codegen_flags: <defaults>
</compile_context>

<pallas_src>
import functools

import jax
import jax.numpy as jnp
from jax.experimental import pallas as pl
from jax.experimental.pallas import tpu as pltpu


def _mlp_kernel(x_ref, w1_ref, b1_ref, w2_ref, b2_ref, w3t_ref, b3_ref, o_ref):
    """3-layer MLP forward. All accumulation in f32. b3_ref lives in SMEM."""
    x = x_ref[...].astype(jnp.float32)            # (tb, in_feat)
    w1 = w1_ref[...].astype(jnp.float32)          # (in_feat, hidden)
    in_feat = x.shape[1]
    w3t = w3t_ref[...].astype(jnp.float32)        # (out_feat, hidden)
    out_feat = w3t.shape[0]

    # ---- Layer 1: in_feat is tiny (2) -> VPU broadcast multiply-add, no MXU round trip.
    if in_feat <= 8:
        acc = x[:, 0:1] * w1[0:1, :]              # (tb,1)*(1,hidden) -> (tb,hidden)
        for k in range(1, in_feat):               # static unroll at trace time
            acc = acc + x[:, k:k + 1] * w1[k:k + 1, :]
    else:
        acc = jnp.dot(x, w1, preferred_element_type=jnp.float32)
    h1 = jnp.maximum(acc + b1_ref[...].astype(jnp.float32), 0.0)

    # ---- Layer 2: hidden x hidden -> MXU (f32 is fine at hidden=32; only cast
    # operands to bf16 here if hidden ever scales past ~256 on v6e/v7x).
    h2 = jnp.dot(h1, w2_ref[...], preferred_element_type=jnp.float32)
    h2 = jnp.maximum(h2 + b2_ref[...].astype(jnp.float32), 0.0)

    # ---- Layer 3: out_feat is tiny (1) -> elementwise multiply + lane reduction,
    # scalar bias splat straight from SMEM.
    if out_feat <= 8:
        cols = [
            jnp.sum(h2 * w3t[n:n + 1, :], axis=-1, keepdims=True) + b3_ref[n]
            for n in range(out_feat)               # static unroll
        ]
        out = cols[0] if out_feat == 1 else jnp.concatenate(cols, axis=-1)
    else:
        # TODO(synk): for wide outputs, pass b3 through VMEM instead of building
        # the bias row from SMEM scalars.
        out = jnp.einsum("bh,oh->bo", h2, w3t, preferred_element_type=jnp.float32)
        bias = jnp.concatenate(
            [jnp.full((1, 1), b3_ref[n], jnp.float32) for n in range(out_feat)],
            axis=-1)
        out = out + bias

    # Single (masked, for out_feat < 128) store; no padding columns, no wrapper slice.
    o_ref[...] = out.astype(o_ref.dtype)


def moon_model_binary_forward(x, params, *, tb=None):
    """Pallas wrapper.

    tb=None -> single grid step over the whole batch (right choice at small
    batch; the kernel is launch/latency bound).  For large batches pass tb as
    a multiple of 8 in the 512-1024 range; weights stay fully resident.  On
    v7x also make sure the resulting grid has >= 2 steps so the "parallel"
    batch axis is sharded across both TensorCores.
    """
    w1, b1, w2, b2, w3t, b3 = params
    B, in_feat = x.shape
    hidden = w1.shape[1]
    out_feat = w3t.shape[0]

    if tb is None:
        tb = B                                    # one grid step
    assert B % tb == 0, "batch must be divisible by the batch tile"
    grid = (B // tb,)

    out = pl.pallas_call(
        _mlp_kernel,
        out_shape=jax.ShapeDtypeStruct((B, out_feat), x.dtype),
        grid=grid,
        in_specs=[
            pl.BlockSpec((tb, in_feat), lambda i: (i, 0)),       # x tile
            pl.BlockSpec((in_feat, hidden), lambda i: (0, 0)),   # W1 (resident)
            pl.BlockSpec((1, hidden), lambda i: (0, 0)),         # b1
            pl.BlockSpec((hidden, hidden), lambda i: (0, 0)),    # W2
            pl.BlockSpec((1, hidden), lambda i: (0, 0)),         # b2
            pl.BlockSpec((out_feat, hidden), lambda i: (0, 0)),  # W3 (out, hidden)
            pl.BlockSpec(memory_space=pltpu.SMEM),               # b3 scalars
        ],
        out_specs=pl.BlockSpec((tb, out_feat), lambda i: (i, 0)),
        compiler_params=pltpu.CompilerParams(
            dimension_semantics=("parallel",),
        ),
        # TODO(synk): if hidden ever scales (>=2048 f32), W2 alone is 16 MiB and
        # double-buffering doubles it -- on v7x (64 MiB VMEM) switch resident
        # weights to bf16, mark the constant-index weight specs
        # pipeline_mode=pl.Buffered(1), tile K with an f32 VMEM accumulator,
        # and set vmem_limit_bytes explicitly with headroom.
    )(x, w1, b1, w2, b2, w3t, b3)
    return out


def init_params(key, in_feat, out_feat, hidden_layers, dtype=jnp.float32):
    """Deterministic init mimicking nn.Linear's default U(-1/sqrt(fan_in), 1/sqrt(fan_in)).

    Params are returned already in kernel layout:
      W1: (in_feat, hidden), W2: (hidden, hidden)  -- pre-transposed for x @ W
      W3: (out_feat, hidden)                       -- row-sliceable, no per-call transpose
      b1, b2: (1, hidden);  b3: (out_feat,) 1-D (lives in SMEM inside the kernel)
    """
    def linear(k, fan_in, fan_out, *, w_shape, b_shape):
        kw, kb = jax.random.split(k)
        bound = 1.0 / jnp.sqrt(jnp.asarray(fan_in, dtype))
        w = jax.random.uniform(kw, w_shape, dtype, -bound, bound)
        b = jax.random.uniform(kb, b_shape, dtype, -bound, bound)
        return w, b

    k1, k2, k3 = jax.random.split(key, 3)
    w1, b1 = linear(k1, in_feat, hidden_layers,
                    w_shape=(in_feat, hidden_layers), b_shape=(1, hidden_layers))
    w2, b2 = linear(k2, hidden_layers, hidden_layers,
                    w_shape=(hidden_layers, hidden_layers), b_shape=(1, hidden_layers))
    w3t, b3 = linear(k3, hidden_layers, out_feat,
                     w_shape=(out_feat, hidden_layers), b_shape=(out_feat,))
    return (w1, b1, w2, b2, w3t, b3)


def reference_forward(x, params):
    w1, b1, w2, b2, w3t, b3 = params
    h1 = jnp.maximum(x @ w1 + b1, 0.0)
    h2 = jnp.maximum(h1 @ w2 + b2, 0.0)
    return h2 @ w3t.T + b3


if __name__ == "__main__":
    # Moon dataset style shapes: 2 input features, binary logit output, hidden=32.
    batch, in_feat, hidden, out_feat = 16, 2, 32, 1

    key = jax.random.PRNGKey(0)
    kx, kp = jax.random.split(key)
    x = jax.random.normal(kx, (batch, in_feat), jnp.float32)
    params = init_params(kp, in_feat, out_feat, hidden)

    fwd = jax.jit(functools.partial(moon_model_binary_forward))
    out = fwd(x, params)
    jax.block_until_ready(out)

    ref = reference_forward(x, params)
    assert out.shape == (batch, out_feat)
    assert jnp.allclose(out, ref, atol=1e-5, rtol=1e-5)

    print("KERNEL_OK")
</pallas_src>

<mosaic_0001>
module attributes {stable_mosaic.version = 11 : i64} {
  func.func @_mlp_kernel(%arg0: i32, %arg1: memref<16x2xf32, #tpu.memory_space<vmem>>, %arg2: memref<2x32xf32, #tpu.memory_space<vmem>>, %arg3: memref<1x32xf32, #tpu.memory_space<vmem>>, %arg4: memref<32x32xf32, #tpu.memory_space<vmem>>, %arg5: memref<1x32xf32, #tpu.memory_space<vmem>>, %arg6: memref<1x32xf32, #tpu.memory_space<vmem>>, %arg7: memref<1xf32, #tpu.memory_space<smem>>, %arg8: memref<16x1xf32, #tpu.memory_space<vmem>>) attributes {dimension_semantics = [#tpu.dimension_semantics<parallel>], iteration_bounds = array<i64: 1>, scalar_prefetch = 0 : i64, scratch_operands = 0 : i64, tpu.core_type = #tpu.core_type<tc>, window_params = [{transform_indices = @transform_0, window_bounds = array<i64: 16, 2>}, {pipeline_mode = #tpu.pipeline_mode<synchronous>, transform_indices = @transform_1, window_bounds = array<i64: 2, 32>}, {pipeline_mode = #tpu.pipeline_mode<synchronous>, transform_indices = @transform_2, window_bounds = array<i64: 1, 32>}, {pipeline_mode = #tpu.pipeline_mode<synchronous>, transform_indices = @transform_3, window_bounds = array<i64: 32, 32>}, {pipeline_mode = #tpu.pipeline_mode<synchronous>, transform_indices = @transform_4, window_bounds = array<i64: 1, 32>}, {pipeline_mode = #tpu.pipeline_mode<synchronous>, transform_indices = @transform_5, window_bounds = array<i64: 1, 32>}, {transform_indices = @transform_6, window_bounds = array<i64: 1>}, {transform_indices = @transform_7, window_bounds = array<i64: 16, 1>}]} {
    %c0 = arith.constant 0 : index
    %c0_0 = arith.constant 0 : index
    %0 = vector.load %arg1[%c0, %c0_0] : memref<16x2xf32, #tpu.memory_space<vmem>>, vector<16x2xf32>
    %c0_1 = arith.constant 0 : index
    %c0_2 = arith.constant 0 : index
    %1 = vector.load %arg2[%c0_1, %c0_2] : memref<2x32xf32, #tpu.memory_space<vmem>>, vector<2x32xf32>
    %c0_3 = arith.constant 0 : index
    %c0_4 = arith.constant 0 : index
    %2 = vector.load %arg6[%c0_3, %c0_4] : memref<1x32xf32, #tpu.memory_space<vmem>>, vector<1x32xf32>
    %3 = vector.extract_strided_slice %0 {offsets = [0, 0], sizes = [16, 1], strides = [1, 1]} : vector<16x2xf32> to vector<16x1xf32>
    %4 = vector.extract_strided_slice %1 {offsets = [0, 0], sizes = [1, 32], strides = [1, 1]} : vector<2x32xf32> to vector<1x32xf32>
    %5 = vector.broadcast %3 : vector<16x1xf32> to vector<16x32xf32>
    %6 = vector.broadcast %4 : vector<1x32xf32> to vector<16x32xf32>
    %7 = arith.mulf %5, %6 : vector<16x32xf32>
    %8 = vector.extract_strided_slice %0 {offsets = [0, 1], sizes = [16, 1], strides = [1, 1]} : vector<16x2xf32> to vector<16x1xf32>
    %9 = vector.extract_strided_slice %1 {offsets = [1, 0], sizes = [1, 32], strides = [1, 1]} : vector<2x32xf32> to vector<1x32xf32>
    %10 = vector.broadcast %8 : vector<16x1xf32> to vector<16x32xf32>
    %11 = vector.broadcast %9 : vector<1x32xf32> to vector<16x32xf32>
    %12 = arith.mulf %10, %11 : vector<16x32xf32>
    %13 = arith.addf %7, %12 : vector<16x32xf32>
    %c0_5 = arith.constant 0 : index
    %c0_6 = arith.constant 0 : index
    %14 = vector.load %arg3[%c0_5, %c0_6] : memref<1x32xf32, #tpu.memory_space<vmem>>, vector<1x32xf32>
    %15 = vector.broadcast %14 : vector<1x32xf32> to vector<16x32xf32>
    %16 = arith.addf %13, %15 : vector<16x32xf32>
    %cst = arith.constant 0.000000e+00 : f32
    %17 = vector.broadcast %cst : f32 to vector<16x32xf32>
    %18 = arith.maximumf %16, %17 : vector<16x32xf32>
    %c0_7 = arith.constant 0 : index
    %c0_8 = arith.constant 0 : index
    %19 = vector.load %arg4[%c0_7, %c0_8] : memref<32x32xf32, #tpu.memory_space<vmem>>, vector<32x32xf32>
    %cst_9 = arith.constant dense<0.000000e+00> : vector<16x32xf32>
    %20 = tpu.matmul %18, %19, %cst_9 {dimension_numbers = #tpu.dot_dimension_numbers<[1], [0], [0], [1], [0, 0, 1, 1], [], []>} : vector<16x32xf32>, vector<32x32xf32>, vector<16x32xf32> -> vector<16x32xf32>
    %c0_10 = arith.constant 0 : index
    %c0_11 = arith.constant 0 : index
    %21 = vector.load %arg5[%c0_10, %c0_11] : memref<1x32xf32, #tpu.memory_space<vmem>>, vector<1x32xf32>
    %22 = vector.broadcast %21 : vector<1x32xf32> to vector<16x32xf32>
    %23 = arith.addf %20, %22 : vector<16x32xf32>
    %cst_12 = arith.constant 0.000000e+00 : f32
    %24 = vector.broadcast %cst_12 : f32 to vector<16x32xf32>
    %25 = arith.maximumf %23, %24 : vector<16x32xf32>
    %26 = vector.broadcast %2 : vector<1x32xf32> to vector<16x32xf32>
    %27 = arith.mulf %25, %26 : vector<16x32xf32>
    %cst_13 = arith.constant dense<0.000000e+00> : vector<16xf32>
    %28 = vector.multi_reduction <add>, %27, %cst_13 [1] : vector<16x32xf32> to vector<16xf32>
    %29 = vector.shape_cast %28 : vector<16xf32> to vector<16x1xf32>
    %c0_14 = arith.constant 0 : index
    %30 = memref.load %arg7[%c0_14] : memref<1xf32, #tpu.memory_space<smem>>
    %31 = vector.broadcast %30 : f32 to vector<16x1xf32>
    %32 = arith.addf %29, %31 : vector<16x1xf32>
    %c0_15 = arith.constant 0 : index
    %c0_16 = arith.constant 0 : index
    %33 = vector.load %arg8[%c0_15, %c0_16] : memref<16x1xf32, #tpu.memory_space<vmem>>, vector<16x1xf32>
    tpu.vector_store %arg8[%c0_15, %c0_16], %32 {strides = array<i32>} : memref<16x1xf32, #tpu.memory_space<vmem>>, vector<16x1xf32>,
    return
  }
  func.func @transform_0(%arg0: i32) -> (i32, i32) {
    %c0_i32 = arith.constant 0 : i32
    %c0_i32_0 = arith.constant 0 : i32
    return %arg0, %c0_i32 : i32, i32
  }
  func.func @transform_1(%arg0: i32) -> (i32, i32) {
    %c0_i32 = arith.constant 0 : i32
    %c0_i32_0 = arith.constant 0 : i32
    %c0_i32_1 = arith.constant 0 : i32
    return %c0_i32, %c0_i32_0 : i32, i32
  }
  func.func @transform_2(%arg0: i32) -> (i32, i32) {
    %c0_i32 = arith.constant 0 : i32
    %c0_i32_0 = arith.constant 0 : i32
    %c0_i32_1 = arith.constant 0 : i32
    return %c0_i32, %c0_i32_0 : i32, i32
  }
  func.func @transform_3(%arg0: i32) -> (i32, i32) {
    %c0_i32 = arith.constant 0 : i32
    %c0_i32_0 = arith.constant 0 : i32
    %c0_i32_1 = arith.constant 0 : i32
    return %c0_i32, %c0_i32_0 : i32, i32
  }
  func.func @transform_4(%arg0: i32) -> (i32, i32) {
    %c0_i32 = arith.constant 0 : i32
    %c0_i32_0 = arith.constant 0 : i32
    %c0_i32_1 = arith.constant 0 : i32
    return %c0_i32, %c0_i32_0 : i32, i32
  }
  func.func @transform_5(%arg0: i32) -> (i32, i32) {
    %c0_i32 = arith.constant 0 : i32
    %c0_i32_0 = arith.constant 0 : i32
    %c0_i32_1 = arith.constant 0 : i32
    return %c0_i32, %c0_i32_0 : i32, i32
  }
  func.func @transform_6(%arg0: i32) -> i32 {
    %c0_i32 = arith.constant 0 : i32
    %c0_i32_0 = arith.constant 0 : i32
    return %c0_i32 : i32
  }
  func.func @transform_7(%arg0: i32) -> (i32, i32) {
    %c0_i32 = arith.constant 0 : i32
    %c0_i32_0 = arith.constant 0 : i32
    return %arg0, %c0_i32 : i32, i32
  }
}

</mosaic_0001>

<llo_original>
// kernel: moon_model_binary_forward.1
$region0: #{moon_model_binary_forward.1}
  #allocation0 [shape = 'u32[]', space=smem, size = 0x4, offset = 0x4, fixed_abs, tag = 'smem constant byte address 0x4 - core index']
  #allocation1 [shape = 'u32[144,128]{1,0:T(1,128)}', space=vmem, size = 0x12000, scoped, tag = 'internal scratch']
  #allocation2 [shape = 'f32[1]{0:T(128)S(6)}', space=smem, size = 0x200, scoped, tag = 'scoped memory for moon_model_binary_forward.1']
  %s0 = inlined_call_operand.vmem [shape: f32[16,2], index: 0, kind: input, shape index: {}]
  %s1 = inlined_call_operand.hbm [shape: f32[2,32], index: 1, kind: input, shape index: {}]
  %s2 = inlined_call_operand.vmem [shape: f32[1,32], index: 2, kind: input, shape index: {}]
  %s3 = inlined_call_operand.vmem [shape: f32[32,32], index: 3, kind: input, shape index: {}]
  %s4 = inlined_call_operand.vmem [shape: f32[1,32], index: 4, kind: input, shape index: {}]
  %s5 = inlined_call_operand.vmem [shape: f32[1,32], index: 5, kind: input, shape index: {}]
  %s6 = inlined_call_operand.<no memory space> [shape: f32[1], index: 6, kind: input, shape index: {}]
  %s7 = inlined_call_operand.vmem [shape: f32[16,1], index: 7, kind: output, shape index: {}]
  %s8 = sld [smem:[#allocation0]]
  $region42: #{moon_model_binary_forward.1} parent=0
    _
  %s10 = ssub.s32 1, %s8
  %s11 = scalar_select 0, %s10, %s8
  %12 = sst [smem:[#allocation2]] %s6
  $region1: #{moon_model_binary_forward.1} parent=0
    #allocation3 [shape = 'u8[1024]{0}', space=vmem, size = 0x400, scoped, tag = 'input window, operand 1, single buffered']
    #allocation4 [shape = 's32[1]{0}', space=sflag, size = 0x4, scoped, tag = 'scoped memory for moon_model_binary_forward.1']
    %13 = vsyncpa [#allocation4], 0
    // Predicated region
    $region2: #{moon_model_binary_forward.1} parent=1 // pred_check
      _
    $region3: #{moon_model_binary_forward.1} parent=1 // pred_check_branch
      %15 = sbr.rel (0) target = $region5
    $region4: #{moon_model_binary_forward.1} parent=1 // pred_region
      _
    $region5: #{moon_model_binary_forward.1} parent=1 // pred_fallthru
      _
    // Predicated region
    $region6: #{moon_model_binary_forward.1} parent=1 // pred_check
      _
    $region7: #{moon_model_binary_forward.1} parent=1 // pred_check_branch
      %17 = sbr.rel (0) target = $region9
    $region8: #{moon_model_binary_forward.1} parent=1 // pred_region
      %s19 = ssub.s32 32, 32
      %20 = vsyncadd [#allocation4], %s19
      %s22 = sshll.u32 [#allocation3], 4
      %s23 = int_to_ptr.vmem [resolvable:$true] %s22
      %25 = dma.hbm_to_vmem [thread:$0]  %s1, 32, %s23, [#allocation4]
    $region9: #{moon_model_binary_forward.1} parent=1 // pred_fallthru
      _
    // Predicated region
    $region10: #{moon_model_binary_forward.1} parent=1 // pred_check
      _
    $region11: #{moon_model_binary_forward.1} parent=1 // pred_check_branch
      %27 = sbr.rel (0) target = $region13
    $region12: #{moon_model_binary_forward.1} parent=1 // pred_region
      _
    $region13: #{moon_model_binary_forward.1} parent=1 // pred_fallthru
      _
    // Predicated region
    $region14: #{moon_model_binary_forward.1} parent=1 // pred_check
      _
    $region15: #{moon_model_binary_forward.1} parent=1 // pred_check_branch
      %29 = sbr.rel (0) target = $region17
    $region16: #{moon_model_binary_forward.1} parent=1 // pred_region
      _
    $region17: #{moon_model_binary_forward.1} parent=1 // pred_fallthru
      _
    // Predicated region
    $region18: #{moon_model_binary_forward.1} parent=1 // pred_check
      _
    $region19: #{moon_model_binary_forward.1} parent=1 // pred_check_branch
      %31 = sbr.rel (0) target = $region21
    $region20: #{moon_model_binary_forward.1} parent=1 // pred_region
      _
    $region21: #{moon_model_binary_forward.1} parent=1 // pred_fallthru
      _
    // Predicated region
    $region22: #{moon_model_binary_forward.1} parent=1 // pred_check
      _
    $region23: #{moon_model_binary_forward.1} parent=1 // pred_check_branch
      %33 = sbr.rel (0) target = $region25
    $region24: #{moon_model_binary_forward.1} parent=1 // pred_region
      _
    $region25: #{moon_model_binary_forward.1} parent=1 // pred_fallthru
      _
    // Predicated region
    $region26: #{moon_model_binary_forward.1} parent=1 // pred_check
      _
    $region27: #{moon_model_binary_forward.1} parent=1 // pred_check_branch
      %35 = sbr.rel (0) target = $region29
    $region28: #{moon_model_binary_forward.1} parent=1 // pred_region
      _
    $region29: #{moon_model_binary_forward.1} parent=1 // pred_fallthru
      _
    // Predicated region
    $region30: #{moon_model_binary_forward.1} parent=1 // pred_check
      _
    $region31: #{moon_model_binary_forward.1} parent=1 // pred_check_branch
      %37 = sbr.rel (0) target = $region33
    $region32: #{moon_model_binary_forward.1} parent=1 // pred_region
      %38 = dma.done [#allocation4], 32
    $region33: #{moon_model_binary_forward.1} parent=1 // pred_fallthru
      _
    %v39 = vld [vmem:[%s0] sm:$0xff]
    %v40 = vld [vmem:[%s0 + $0x8] sm:$0xff]
    %v41 = vld [vmem:[#allocation3] sm:$0x3]
    %v42 = vld [vmem:[%s5] sm:$0x1]
    %44 = vset.pattern.permute.xlu0 0
    %45 = vperm.xlu0 %44, %v39
    %v46 = vpop.permute.xlu0 %45
    %49 = vset.pattern.permute.xlu0 0
    %50 = vperm.xlu0 %49, %v40
    %v51 = vpop.permute.xlu0 %50
    %v53 = vlaneseq
    %v54 = vshrl.u32 %v53, 7
    %v55 = vsub.s32 0, %v54
    %v56 = vrot.slane %v41, %v55
    %v57 = vmul.f32 %v46, %v56
    %v58 = vmul.f32 %v51, %v56
    %59 = vset.pattern.permute.xlu0 1
    %60 = vperm.xlu0 %59, %v39
    %v61 = vpop.permute.xlu0 %60
    %63 = vset.pattern.permute.xlu0 1
    %64 = vperm.xlu0 %63, %v40
    %v65 = vpop.permute.xlu0 %64
    %v67 = vlaneseq
    %v68 = vshrl.u32 %v67, 7
    %v69 = vsub.s32 1, %v68
    %v70 = vrot.slane %v41, %v69
    %v71 = vmul.f32 %v61, %v70
    %v72 = vmul.f32 %v65, %v70
    %v73 = vadd.f32 %v57, %v71
    %v74 = vadd.f32 %v58, %v72
    %v75 = vld [vmem:[%s2] sm:$0x1]
    %v77 = vlaneseq
    %v78 = vshrl.u32 %v77, 7
    %v79 = vsub.s32 0, %v78
    %v80 = vrot.slane %v75, %v79
    %v82 = vadd.f32 %v73, %v80
    %v83 = vadd.f32 %v74, %v80
    %v84 = vmax.f32 %v82, 0.0
    %v85 = vmax.f32 %v83, 0.0
    %v86 = vld [vmem:[%s3] sm:$0xff]
    %v87 = vld [vmem:[%s3 + $0x8] sm:$0xff]
    %v88 = vld [vmem:[%s3 + $0x10] sm:$0xff]
    %v89 = vld [vmem:[%s3 + $0x18] sm:$0xff]
    %v90 = vld [vmem:[%s4] sm:$0x1]
    %v92 = vlaneseq
    %v93 = vshrl.u32 %v92, 7
    %v94 = vsub.s32 0, %v93
    %v95 = vrot.slane %v90, %v94
    %vm97 = vcmask 261120
    %v99 = vsel %vm97, %v84, 0
    %v102 = vsel %vm97, %v85, 0
    %104 = vmatprep.subr.mxu0 0.0
    %105 = vmatpush1.msra.mxu0 %v86
    %106 = vmatprep.subr.mxu0 0.0
    %107 = vmatpush1.msra.mxu0 %v87
    %108 = vmatprep.subr.mxu0 0.0
    %109 = vmatpush1.msra.mxu0 %v88
    %110 = vmatprep.subr.mxu0 0.0
    %111 = vmatpush1.msra.mxu0 %v89
    %112 = vmatprep.subr.mxu0 0.0
    %113 = vmatpush1.msra.mxu0 0.0
    %114 = vmatprep.subr.mxu0 0.0
    %115 = vmatpush1.msra.mxu0 0.0
    %116 = vmatprep.subr.mxu0 0.0
    %117 = vmatpush1.msra.mxu0 0.0
    %118 = vmatprep.subr.mxu0 0.0
    %119 = vmatpush1.msra.mxu0 0.0
    %120 = vmatprep.subr.mxu0 0.0
    %121 = vmatpush1.msra.mxu0 0.0
    %122 = vmatprep.subr.mxu0 0.0
    %123 = vmatpush1.msra.mxu0 0.0
    %124 = vmatprep.subr.mxu0 0.0
    %125 = vmatpush1.msra.mxu0 0.0
    %126 = vmatprep.subr.mxu0 0.0
    %127 = vmatpush1.msra.mxu0 0.0
    %128 = vmatprep.subr.mxu0 0.0
    %129 = vmatpush1.msra.mxu0 0.0
    %130 = vmatprep.subr.mxu0 0.0
    %131 = vmatpush1.msra.mxu0 0.0
    %132 = vmatprep.subr.mxu0 0.0
    %133 = vmatpush1.msra.mxu0 0.0
    %134 = vmatprep.subr.mxu0 0.0
    %135 = vmatpush1.msra.mxu0 0.0
    %136 = vmatprep.subr.mxu0 0.0
    %137 = vmatpush1.msra.mxu0 0.0
    %138 = vmatprep.subr.mxu0 0.0
    %139 = vmatpush1.msra.mxu0 0.0
    %140 = vmatprep.subr.mxu0 0.0
    %141 = vmatpush1.msra.mxu0 0.0
    %142 = vmatprep.subr.mxu0 0.0
    %143 = vmatpush1.msra.mxu0 0.0
    %144 = vmatprep.subr.mxu0 0.0
    %145 = vmatpush1.msra.mxu0 0.0
    %146 = vmatprep.subr.mxu0 0.0
    %147 = vmatpush1.msra.mxu0 0.0
    %148 = vmatprep.subr.mxu0 0.0
    %149 = vmatpush1.msra.mxu0 0.0
    %150 = vmatprep.subr.mxu0 0.0
    %151 = vmatpush1.msra.mxu0 0.0
    %152 = vmatprep.subr.mxu0 0.0
    %153 = vmatpush1.msra.mxu0 0.0
    %154 = vmatprep.subr.mxu0 0.0
    %155 = vmatpush1.msra.mxu0 0.0
    %156 = vmatprep.subr.mxu0 0.0
    %157 = vmatpush1.msra.mxu0 0.0
    %158 = vmatprep.subr.mxu0 0.0
    %159 = vmatpush1.msra.mxu0 0.0
    %160 = vmatprep.subr.mxu0 0.0
    %161 = vmatpush1.msra.mxu0 0.0
    %162 = vmatprep.subr.mxu0 0.0
    %163 = vmatpush1.msra.mxu0 0.0
    %164 = vmatprep.subr.mxu0 0.0
    %165 = vmatpush1.msra.mxu0 0.0
    %166 = vmatprep.subr.mxu0 0.0
    %167 = vmatpush1.msra.mxu0 0.0
    %168 = vmatprep.mubr.f32.mxu0 0.0
    %169 = vmatmul.mubr.f32.gmra.mrb[0].mxu0 %v99
    %v170 = vpop.f32.mrb[0].mxu0
    %v171 = vadd.f32 %v95, %v170
    %v172 = vpop.f32.mrb[0].mxu0
    %173 = vmatprep.mubr.f32.mxu0 0.0
    %174 = vmatmul.mubr.f32.gmra.mrb[0].mxu0 %v102
    %v175 = vpop.f32.mrb[0].mxu0
    %v176 = vadd.f32 %v95, %v175
    %v177 = vpop.f32.mrb[0].mxu0
    %178 = vdwg.mxu0
    %v179 = vmax.f32 %v171, 0.0
    %v180 = vmax.f32 %v176, 0.0
    %v182 = vlaneseq
    %v183 = vshrl.u32 %v182, 7
    %v184 = vsub.s32 0, %v183
    %v185 = vrot.slane %v42, %v184
    %v187 = vmul.f32 %v179, %v185
    %v188 = vmul.f32 %v180, %v185
    %v189 = vsel %vm97, %v187, 0.0
    %190 = vadd.xlane.f32.xlu0 %v189
    %v191 = vpop.xlane.xlu0 %190
    %v192 = vsel %vm97, %v188, 0.0
    %193 = vadd.xlane.f32.xlu0 %v192
    %v194 = vpop.xlane.xlu0 %193
    %s195 = sld [smem:[#allocation2]]
    %v196 = vstv %s195
    %v197 = vadd.f32 %v191, %v196
    %v198 = vadd.f32 %v194, %v196
    %vm199 = vcmask 7168
    %200 = vst.msk [vmem:[%s7] sm:$0xff] %vm199, %v197
    %201 = vst.msk [vmem:[%s7 + $0x8] sm:$0xff] %vm199, %v198
    // Predicated region
    $region34: #{moon_model_binary_forward.1} parent=1 // pred_check
      _
    $region35: #{moon_model_binary_forward.1} parent=1 // pred_check_branch
      %203 = sbr.rel (0) target = $region37
    $region36: #{moon_model_binary_forward.1} parent=1 // pred_region
      _
    $region37: #{moon_model_binary_forward.1} parent=1 // pred_fallthru
      _
    // Predicated region
    $region38: #{moon_model_binary_forward.1} parent=1 // pred_check
      _
    $region39: #{moon_model_binary_forward.1} parent=1 // pred_check_branch
      %205 = sbr.rel (0) target = $region41
    $region40: #{moon_model_binary_forward.1} parent=1 // pred_region
      _
    $region41: #{moon_model_binary_forward.1} parent=1 // pred_fallthru
      _
    %206 = vsyncpa [#allocation4], 1

</llo_original>
